<compile_context>
chip_gen: v7x
topology: tpu7x:2x2x1
jax: 0.10.0
libtpu: 0.0.40
codegen_flags: <defaults>
</compile_context>

<pallas_src>
import functools

import jax
import jax.numpy as jnp
from jax import lax
from jax.experimental import pallas as pl
from jax.experimental.pallas import tpu as pltpu

GAMMA = 5          # matches the module's self.gamma
LANES = 128
SUBLANES = 8
MAX_TR = 4096      # 3 streams * 2 buffers * 4096*128*4B ~= 12.6 MiB VMEM (f32)


def _sublane_align(dtype):
    """Min second-to-last block multiple for a dtype (8 f32 / 16 bf16 / 32 i8)."""
    return max(SUBLANES, 32 // jnp.dtype(dtype).itemsize)


def _focal_kernel(x_ref, t_ref, o_ref, *, pos_bias, hw, needs_mask):
    # x_ref: (1, 2, TR, 128) logits; t_ref: (1, TR, 128); o_ref: (1, 1, 8, 128)
    x0 = x_ref[0, 0].astype(jnp.float32)
    x1 = x_ref[0, 1].astype(jnp.float32)
    t = t_ref[0].astype(jnp.float32)
    tr, lanes = x0.shape

    # Margin form of the 2-class softmax focal loss:
    #   u  = (1-2t)*(x1-x0)          (>0 <=> wrong class favored)
    #   pt = sigmoid(-u)             (prob. of the true class)
    #   -log(pt) = softplus(u) = max(u,0) + log(1+exp(-|u|))   (stable)
    d = x1 - x0
    u = (1.0 - 2.0 * t) * d
    e = jnp.exp(-jnp.abs(u))                       # EUP
    one_plus_e = 1.0 + e
    inv = pl.reciprocal(one_plus_e, approx=True)   # EUP slot, no VALU refine
    pt = jnp.where(u >= 0.0, e, 1.0) * inv         # = sigmoid(-u)
    nll = jnp.maximum(u, 0.0) + jnp.log(one_plus_e)

    om = 1.0 - pt
    om2 = om * om
    focal = om2 * om2 * om                         # (1-pt)^5, 3 multiplies

    # class weight posBias*t + (1-posBias)*(1-t), folded affine blend.
    w = (1.0 - pos_bias) + (2.0 * pos_bias - 1.0) * t

    loss = focal * nll * w

    def _reduce_store(vals):
        # 1024-way split sum on the VPU into the (8,128) partial-sum block;
        # the single cross-lane reduce happens once, in the wrapper.
        o_ref[0, 0] = vals.reshape(tr // SUBLANES, SUBLANES, lanes).sum(axis=0)

    if not needs_mask:
        _reduce_store(loss)
    else:
        # All wrapper zero-padding and Pallas partial-tile garbage lives in
        # the last row tile; interior tiles take the unmasked fast path.
        j = pl.program_id(1)
        is_last = j == pl.num_programs(1) - 1

        @pl.when(is_last)
        def _():
            row = lax.broadcasted_iota(jnp.int32, (tr, lanes), 0)
            lane = lax.broadcasted_iota(jnp.int32, (tr, lanes), 1)
            flat = (j * tr + row) * lanes + lane
            _reduce_store(jnp.where(flat < hw, loss, 0.0))

        @pl.when(jnp.logical_not(is_last))
        def _():
            _reduce_store(loss)


def focal_loss(logits_nchw, target_nhw, pos_weight):
    """logits_nchw: (N, 2, H, W); target_nhw: (N, H, W) with 0/1 values."""
    N, C, H, W = logits_nchw.shape
    assert C == 2, "FocalLoss module implies exactly 2 classes"
    HW = H * W

    align = max(_sublane_align(logits_nchw.dtype),
                _sublane_align(target_nhw.dtype))

    # Pad the flattened spatial dim only as far as strictly needed:
    #   * to a multiple of 128 (skipped when HW % 128 == 0, the common case),
    #   * up to one full (align, 128) tile for tiny inputs.
    # Ragged last row tiles are handled by the in-kernel mask, not by padding.
    hw_pad = ((HW + LANES - 1) // LANES) * LANES
    hw_pad = max(hw_pad, align * LANES)

    x = logits_nchw.reshape(N, 2, HW)      # contiguous reshape, no copy
    t = target_nhw.reshape(N, HW)
    if hw_pad != HW:
        x = jnp.pad(x, ((0, 0), (0, 0), (0, hw_pad - HW)))
        t = jnp.pad(t, ((0, 0), (0, hw_pad - HW)))

    R = hw_pad // LANES                    # number of 128-lane rows, >= align
    x = x.reshape(N, 2, R, LANES)
    t = t.reshape(N, R, LANES)

    TR = min(MAX_TR, (R // align) * align)  # aligned row tile, TR <= R
    num_row_tiles = pl.cdiv(R, TR)
    needs_mask = (hw_pad != HW) or (R % TR != 0)

    kernel = functools.partial(
        _focal_kernel, pos_bias=float(pos_weight), hw=HW, needs_mask=needs_mask)

    partial_sums = pl.pallas_call(
        kernel,
        out_shape=jax.ShapeDtypeStruct(
            (N, num_row_tiles, SUBLANES, LANES), jnp.float32),
        grid_spec=pltpu.PrefetchScalarGridSpec(
            num_scalar_prefetch=0,
            grid=(N, num_row_tiles),
            in_specs=[
                pl.BlockSpec((1, 2, TR, LANES), lambda n, j: (n, 0, j, 0)),
                pl.BlockSpec((1, TR, LANES), lambda n, j: (n, j, 0)),
            ],
            out_specs=pl.BlockSpec(
                (1, 1, SUBLANES, LANES), lambda n, j: (n, j, 0, 0)),
        ),
        compiler_params=pltpu.CompilerParams(
            dimension_semantics=("parallel", "parallel"),
        ),
    )(x, t)

    return jnp.sum(partial_sums) / jnp.float32(N * HW)


def focal_loss_ref(logits_nchw, target_nhw, pos_weight):
    """Pure-JAX reference mirroring the PyTorch forward."""
    p = jax.nn.softmax(logits_nchw.astype(jnp.float32), axis=1)
    t = target_nhw.astype(jnp.float32)[:, None]            # (N,1,H,W)
    onehot = jnp.concatenate([1.0 - t, t], axis=1)          # (N,2,H,W)
    pt = (p * onehot).sum(axis=1)                           # (N,H,W)
    loss = (1.0 - pt) ** GAMMA * (-jnp.log(pt))
    w = pos_weight * onehot[:, 1] + (1.0 - pos_weight) * onehot[:, 0]
    return (loss * w).mean()


if __name__ == "__main__":
    key = jax.random.PRNGKey(0)
    k1, k2 = jax.random.split(key)

    N, C, H, W = 2, 2, 16, 16
    pos_weight = 0.75  # the module's posWeight constructor arg (deterministic)

    logits = jax.random.normal(k1, (N, C, H, W), dtype=jnp.float32)
    target = (jax.random.uniform(k2, (N, H, W)) > 0.5).astype(jnp.float32)

    out = focal_loss(logits, target, pos_weight)
    out = jax.block_until_ready(out)

    ref = focal_loss_ref(logits, target, pos_weight)
    # pl.reciprocal(approx=True) trades a few mantissa bits for the EUP slot;
    # validate against the exact reference with a correspondingly looser rtol.
    assert jnp.allclose(out, ref, rtol=1e-2, atol=1e-6), (out, ref)

    print("KERNEL_OK")
</pallas_src>

<mosaic_0001>
module attributes {stable_mosaic.version = 11 : i64} {
  func.func @_focal_kernel(%arg0: i32, %arg1: i32, %arg2: memref<1x2x8x128xf32, #tpu.memory_space<vmem>>, %arg3: memref<1x8x128xf32, #tpu.memory_space<vmem>>, %arg4: memref<1x1x8x128xf32, #tpu.memory_space<vmem>>) attributes {dimension_semantics = [#tpu.dimension_semantics<parallel>, #tpu.dimension_semantics<parallel>], iteration_bounds = array<i64: 2, 1>, scalar_prefetch = 0 : i64, scratch_operands = 0 : i64, tpu.core_type = #tpu.core_type<tc>, window_params = [{transform_indices = @transform_0, window_bounds = array<i64: 1, 2, 8, 128>}, {transform_indices = @transform_1, window_bounds = array<i64: 1, 8, 128>}, {transform_indices = @transform_2, window_bounds = array<i64: 1, 1, 8, 128>}]} {
    %c0 = arith.constant 0 : index
    %c0_0 = arith.constant 0 : index
    %c0_1 = arith.constant 0 : index
    %c0_2 = arith.constant 0 : index
    %0 = vector.load %arg2[%c0, %c0_0, %c0_1, %c0_2] : memref<1x2x8x128xf32, #tpu.memory_space<vmem>>, vector<1x1x8x128xf32>
    %1 = vector.shape_cast %0 : vector<1x1x8x128xf32> to vector<8x128xf32>
    %c0_3 = arith.constant 0 : index
    %c1 = arith.constant 1 : index
    %c0_4 = arith.constant 0 : index
    %c0_5 = arith.constant 0 : index
    %2 = vector.load %arg2[%c0_3, %c1, %c0_4, %c0_5] : memref<1x2x8x128xf32, #tpu.memory_space<vmem>>, vector<1x1x8x128xf32>
    %3 = vector.shape_cast %2 : vector<1x1x8x128xf32> to vector<8x128xf32>
    %c0_6 = arith.constant 0 : index
    %c0_7 = arith.constant 0 : index
    %c0_8 = arith.constant 0 : index
    %4 = vector.load %arg3[%c0_6, %c0_7, %c0_8] : memref<1x8x128xf32, #tpu.memory_space<vmem>>, vector<1x8x128xf32>
    %5 = vector.shape_cast %4 : vector<1x8x128xf32> to vector<8x128xf32>
    %6 = arith.subf %3, %1 : vector<8x128xf32>
    %cst = arith.constant 2.000000e+00 : f32
    %7 = vector.broadcast %cst : f32 to vector<8x128xf32>
    %8 = arith.mulf %7, %5 : vector<8x128xf32>
    %cst_9 = arith.constant 1.000000e+00 : f32
    %9 = vector.broadcast %cst_9 : f32 to vector<8x128xf32>
    %10 = arith.subf %9, %8 : vector<8x128xf32>
    %11 = arith.mulf %10, %6 : vector<8x128xf32>
    %12 = math.absf %11 : vector<8x128xf32>
    %cst_10 = arith.constant 0.000000e+00 : f32
    %13 = vector.broadcast %cst_10 : f32 to vector<8x128xf32>
    %14 = arith.subf %13, %12 : vector<8x128xf32>
    %15 = math.exp %14 : vector<8x128xf32>
    %cst_11 = arith.constant 1.000000e+00 : f32
    %16 = vector.broadcast %cst_11 : f32 to vector<8x128xf32>
    %17 = arith.addf %16, %15 : vector<8x128xf32>
    %18 = tpu.reciprocal %17 {approx = true} : vector<8x128xf32> -> vector<8x128xf32>
    %cst_12 = arith.constant 0.000000e+00 : f32
    %19 = vector.broadcast %cst_12 : f32 to vector<8x128xf32>
    %20 = arith.cmpf oge, %11, %19 : vector<8x128xf32>
    %cst_13 = arith.constant 1.000000e+00 : f32
    %21 = vector.broadcast %cst_13 : f32 to vector<8x128xf32>
    %22 = arith.select %20, %15, %21 : vector<8x128xi1>, vector<8x128xf32>
    %23 = arith.mulf %22, %18 : vector<8x128xf32>
    %cst_14 = arith.constant 0.000000e+00 : f32
    %24 = vector.broadcast %cst_14 : f32 to vector<8x128xf32>
    %25 = arith.maximumf %11, %24 : vector<8x128xf32>
    %26 = math.log %17 : vector<8x128xf32>
    %27 = arith.addf %25, %26 : vector<8x128xf32>
    %cst_15 = arith.constant 1.000000e+00 : f32
    %28 = vector.broadcast %cst_15 : f32 to vector<8x128xf32>
    %29 = arith.subf %28, %23 : vector<8x128xf32>
    %30 = arith.mulf %29, %29 : vector<8x128xf32>
    %31 = arith.mulf %30, %30 : vector<8x128xf32>
    %32 = arith.mulf %31, %29 : vector<8x128xf32>
    %cst_16 = arith.constant 5.000000e-01 : f32
    %33 = vector.broadcast %cst_16 : f32 to vector<8x128xf32>
    %34 = arith.mulf %33, %5 : vector<8x128xf32>
    %cst_17 = arith.constant 2.500000e-01 : f32
    %35 = vector.broadcast %cst_17 : f32 to vector<8x128xf32>
    %36 = arith.addf %35, %34 : vector<8x128xf32>
    %37 = arith.mulf %32, %27 : vector<8x128xf32>
    %38 = arith.mulf %37, %36 : vector<8x128xf32>
    %c0_i32 = arith.constant 0 : i32
    %39 = arith.cmpi eq, %arg1, %c0_i32 : i32
    %40 = arith.extui %39 : i1 to i32
    %c0_i32_18 = arith.constant 0 : i32
    %41 = arith.cmpi ne, %40, %c0_i32_18 : i32
    scf.if %41 {
      %45 = tpu.iota {dimensions = array<i32: 0>} : vector<8x128xi32>
      %46 = tpu.iota {dimensions = array<i32: 1>} : vector<8x128xi32>
      %c8_i32 = arith.constant 8 : i32
      %47 = arith.muli %arg1, %c8_i32 : i32
      %48 = vector.broadcast %47 : i32 to vector<8x128xi32>
      %49 = arith.addi %48, %45 : vector<8x128xi32>
      %c128_i32 = arith.constant 128 : i32
      %50 = vector.broadcast %c128_i32 : i32 to vector<8x128xi32>
      %51 = arith.muli %49, %50 : vector<8x128xi32>
      %52 = arith.addi %51, %46 : vector<8x128xi32>
      %c256_i32 = arith.constant 256 : i32
      %53 = vector.broadcast %c256_i32 : i32 to vector<8x128xi32>
      %54 = arith.cmpi slt, %52, %53 : vector<8x128xi32>
      %cst_20 = arith.constant 0.000000e+00 : f32
      %55 = vector.broadcast %cst_20 : f32 to vector<8x128xf32>
      %56 = arith.select %54, %38, %55 : vector<8x128xi1>, vector<8x128xf32>
      %57 = vector.shape_cast %56 : vector<8x128xf32> to vector<1x8x128xf32>
      %cst_21 = arith.constant dense<0.000000e+00> : vector<8x128xf32>
      %58 = vector.multi_reduction <add>, %57, %cst_21 [0] : vector<1x8x128xf32> to vector<8x128xf32>
      %c0_22 = arith.constant 0 : index
      %c0_23 = arith.constant 0 : index
      %c0_24 = arith.constant 0 : index
      %c0_25 = arith.constant 0 : index
      %59 = vector.load %arg4[%c0_22, %c0_23, %c0_24, %c0_25] : memref<1x1x8x128xf32, #tpu.memory_space<vmem>>, vector<1x1x8x128xf32>
      %60 = vector.shape_cast %59 : vector<1x1x8x128xf32> to vector<8x128xf32>
      %61 = vector.shape_cast %58 : vector<8x128xf32> to vector<1x1x8x128xf32>
      tpu.vector_store %arg4[%c0_22, %c0_23, %c0_24, %c0_25], %61 {strides = array<i32>} : memref<1x1x8x128xf32, #tpu.memory_space<vmem>>, vector<1x1x8x128xf32>,
    } else {
    }
    %true = arith.constant true
    %42 = arith.xori %39, %true : i1
    %43 = arith.extui %42 : i1 to i32
    %c0_i32_19 = arith.constant 0 : i32
    %44 = arith.cmpi ne, %43, %c0_i32_19 : i32
    scf.if %44 {
      %45 = vector.shape_cast %38 : vector<8x128xf32> to vector<1x8x128xf32>
      %cst_20 = arith.constant dense<0.000000e+00> : vector<8x128xf32>
      %46 = vector.multi_reduction <add>, %45, %cst_20 [0] : vector<1x8x128xf32> to vector<8x128xf32>
      %c0_21 = arith.constant 0 : index
      %c0_22 = arith.constant 0 : index
      %c0_23 = arith.constant 0 : index
      %c0_24 = arith.constant 0 : index
      %47 = vector.load %arg4[%c0_21, %c0_22, %c0_23, %c0_24] : memref<1x1x8x128xf32, #tpu.memory_space<vmem>>, vector<1x1x8x128xf32>
      %48 = vector.shape_cast %47 : vector<1x1x8x128xf32> to vector<8x128xf32>
      %49 = vector.shape_cast %46 : vector<8x128xf32> to vector<1x1x8x128xf32>
      tpu.vector_store %arg4[%c0_21, %c0_22, %c0_23, %c0_24], %49 {strides = array<i32>} : memref<1x1x8x128xf32, #tpu.memory_space<vmem>>, vector<1x1x8x128xf32>,
    } else {
    }
    return
  }
  func.func @transform_0(%arg0: i32, %arg1: i32) -> (i32, i32, i32, i32) {
    %c0_i32 = arith.constant 0 : i32
    %c0_i32_0 = arith.constant 0 : i32
    %c0_i32_1 = arith.constant 0 : i32
    return %arg0, %c0_i32, %arg1, %c0_i32_0 : i32, i32, i32, i32
  }
  func.func @transform_1(%arg0: i32, %arg1: i32) -> (i32, i32, i32) {
    %c0_i32 = arith.constant 0 : i32
    %c0_i32_0 = arith.constant 0 : i32
    return %arg0, %arg1, %c0_i32 : i32, i32, i32
  }
  func.func @transform_2(%arg0: i32, %arg1: i32) -> (i32, i32, i32, i32) {
    %c0_i32 = arith.constant 0 : i32
    %c0_i32_0 = arith.constant 0 : i32
    %c0_i32_1 = arith.constant 0 : i32
    return %arg0, %arg1, %c0_i32, %c0_i32_0 : i32, i32, i32, i32
  }
}

</mosaic_0001>

<llo_original>
// kernel: tpu_custom_call.1
$region0: #{tpu_custom_call.1}
  #allocation0 [shape = 'u32[]', space=smem, size = 0x4, offset = 0x4, fixed_abs, tag = 'smem constant byte address 0x4 - core index']
  #allocation1 [shape = 'u32[144,128]{1,0:T(1,128)}', space=vmem, size = 0x12000, scoped, tag = 'internal scratch']
  %s0 = inlined_call_operand.hbm [shape: f32[2,2,8,128], index: 0, kind: input, shape index: {}]
  %s1 = inlined_call_operand.hbm [shape: f32[2,8,128], index: 1, kind: input, shape index: {}]
  %s2 = inlined_call_operand.hbm [shape: f32[2,1,8,128], index: 2, kind: output, shape index: {}]
  %s3 = sld [smem:[#allocation0]]
  $region57: #{tpu_custom_call.1} parent=0
    _
  %s5 = ssub.s32 1, %s3
  %s6 = scalar_select 0, %s5, %s3
  $region1: #{tpu_custom_call.1} parent=0
    #allocation2 [shape = 'u8[16384]{0}', space=vmem, size = 0x4000, scoped, tag = 'input window, operand 0']
    #allocation3 [shape = 's32[2]{0}', space=sflag, size = 0x8, scoped, tag = 'scoped memory for tpu_custom_call.1']
    #allocation4 [shape = 's32[2]{0}', space=sflag, size = 0x8, scoped, tag = 'scoped memory for tpu_custom_call.1']
    #allocation5 [shape = 'u8[8192]{0}', space=vmem, size = 0x2000, scoped, tag = 'input window, operand 1']
    #allocation6 [shape = 's32[2]{0}', space=sflag, size = 0x8, scoped, tag = 'scoped memory for tpu_custom_call.1']
    #allocation7 [shape = 'u8[8192]{0}', space=vmem, size = 0x2000, scoped, tag = 'output window, operand 0']
    %7 = vsyncpa [#allocation3], 0
    %s8 = scalar_lea.sflag [#allocation3], 1
    %9 = vsyncpa %s8, 0
    %10 = vsyncpa [#allocation6], 0
    %s11 = scalar_lea.sflag [#allocation6], 1
    %12 = vsyncpa %s11, 0
    %13 = vsyncpa [#allocation4], 0
    %s14 = scalar_lea.sflag [#allocation4], 1
    %15 = vsyncpa %s14, 0
    loop: start=0, step=1, limit=4
    $region2: #{tpu_custom_call.1} parent=1 // loop_pre_header
      _
    $region3: #{tpu_custom_call.1} parent=1 // loop_header
      %s17 = sphi 0, %s21
      %p18 = scmp.ge.s32.totalorder %s17, 4
      %s24 = sphi 0, %s36
      %s25 = sphi 0, %s32
      %s26 = sphi 0, %s24
      %s27 = sphi 0, %s25
      %s28 = sphi 0, %s26
      %s29 = sphi 0, %s27
      %s41 = sphi 0, %s43
      %s44 = sphi 0, %s41
      %s45 = sphi 0, %s44
      %s61 = sphi 0, %s45
      %s69 = sphi 0, %s71
      %s72 = sphi 0, %s69
      %s73 = sphi 0, %s72
      %s89 = sphi 0, %s73
      %s97 = sphi 0, %s99
      %s100 = sphi 0, %s97
      %s101 = sphi 0, %s100
      %s117 = sphi 0, %s101
    $region4: #{tpu_custom_call.1} parent=1 // loop_header_branch
      %20 = sbr.rel (%p18) target = $region8
    $region5: #{tpu_custom_call.1} parent=1 // loop_body
      %s22 = ssub.s32 %s17, 1
      %s23 = ssub.s32 %s17, 2
      %s30 = sadd.s32 1, %s25
      %p31 = scmp.ge.s32.totalorder %s30, 1
      %s32 = scalar_select %p31, 0, %s30
      %s33 = sadd.s32 1, %s24
      %s34 = scalar_select %p31, %s33, %s24
      %p35 = scmp.ge.s32.totalorder %s34, 2
      %s36 = scalar_select %p35, 0, %s34
      %s37 = ssub.s32 %s24, %s36
      %s38 = ssub.s32 %s25, %s32
      %s39 = sor.u32 %s37, %s38
      %p40 = scmp.eq.s32.totalorder %s39, 0
      %s42 = sadd.s32 %s41, 1
      %s43 = scalar_select %p40, %s41, %s42
      %p46 = pneg %p40
      %p47 = scmp.eq.s32.totalorder %s17, 1
      %p48 = por %p46, %p47
      %p49 = scmp.ne.s32.totalorder %s41, %s44
      %p50 = scmp.eq.s32.totalorder %s17, 0
      %p51 = por %p49, %p50
      %p52 = scmp.ne.s32.totalorder %s41, %s44
      %p53 = scmp.eq.s32.totalorder %s22, 1
      %p54 = por %p52, %p53
      %p55 = scmp.ne.s32.totalorder %s44, %s45
      %p56 = scmp.eq.s32.totalorder %s22, 0
      %p57 = por %p55, %p56
      %p58 = scmp.ne.s32.totalorder %s44, %s45
      %p59 = scmp.eq.s32.totalorder %s23, 1
      %p60 = por %p58, %p59
      %p62 = scmp.ne.s32.totalorder %s45, %s61
      %p63 = scmp.eq.s32.totalorder %s23, 0
      %p64 = por %p62, %p63
      %s65 = ssub.s32 %s24, %s36
      %s66 = ssub.s32 %s25, %s32
      %s67 = sor.u32 %s65, %s66
      %p68 = scmp.eq.s32.totalorder %s67, 0
      %s70 = sadd.s32 %s69, 1
      %s71 = scalar_select %p68, %s69, %s70
      %p74 = pneg %p68
      %p75 = scmp.eq.s32.totalorder %s17, 1
      %p76 = por %p74, %p75
      %p77 = scmp.ne.s32.totalorder %s69, %s72
      %p78 = scmp.eq.s32.totalorder %s17, 0
      %p79 = por %p77, %p78
      %p80 = scmp.ne.s32.totalorder %s69, %s72
      %p81 = scmp.eq.s32.totalorder %s22, 1
      %p82 = por %p80, %p81
      %p83 = scmp.ne.s32.totalorder %s72, %s73
      %p84 = scmp.eq.s32.totalorder %s22, 0
      %p85 = por %p83, %p84
      %p86 = scmp.ne.s32.totalorder %s72, %s73
      %p87 = scmp.eq.s32.totalorder %s23, 1
      %p88 = por %p86, %p87
      %p90 = scmp.ne.s32.totalorder %s73, %s89
      %p91 = scmp.eq.s32.totalorder %s23, 0
      %p92 = por %p90, %p91
      %s93 = ssub.s32 %s24, %s36
      %s94 = ssub.s32 %s25, %s32
      %s95 = sor.u32 %s93, %s94
      %p96 = scmp.eq.s32.totalorder %s95, 0
      %s98 = sadd.s32 %s97, 1
      %s99 = scalar_select %p96, %s97, %s98
      %p102 = pneg %p96
      %p103 = scmp.eq.s32.totalorder %s17, 1
      %p104 = por %p102, %p103
      %p105 = scmp.ne.s32.totalorder %s97, %s100
      %p106 = scmp.eq.s32.totalorder %s17, 0
      %p107 = por %p105, %p106
      %p108 = scmp.ne.s32.totalorder %s97, %s100
      %p109 = scmp.eq.s32.totalorder %s22, 1
      %p110 = por %p108, %p109
      %p111 = scmp.ne.s32.totalorder %s100, %s101
      %p112 = scmp.eq.s32.totalorder %s22, 0
      %p113 = por %p111, %p112
      %p114 = scmp.ne.s32.totalorder %s100, %s101
      %p115 = scmp.eq.s32.totalorder %s23, 1
      %p116 = por %p114, %p115
      %p118 = scmp.ne.s32.totalorder %s101, %s117
      %p119 = scmp.eq.s32.totalorder %s23, 0
      %p120 = por %p118, %p119
      %p121 = scmp.le.s32.totalorder 1, %s17
      %p122 = scmp.lt.s32.totalorder %s17, 3
      %p123 = pnand %p121, %p122
      %p124 = pneg %p123
      // Predicated region
      $region9: #{tpu_custom_call.1} parent=5 // pred_check
        _
      $region10: #{tpu_custom_call.1} parent=5 // pred_check_branch
        %126 = sbr.rel (%p123) target = $region12
      $region11: #{tpu_custom_call.1} parent=5 // pred_region
        %s127 = ssub.s32 %s17, 1
      $region12: #{tpu_custom_call.1} parent=5 // pred_fallthru
        _
      %p128 = scmp.lt.s32.totalorder %s17, 2
      // Predicated region
      $region13: #{tpu_custom_call.1} parent=5 // pred_check
        %p129 = pneg %p128
      $region14: #{tpu_custom_call.1} parent=5 // pred_check_branch
        %131 = sbr.rel (%p129) target = $region16
      $region15: #{tpu_custom_call.1} parent=5 // pred_region
        // Predicated region
        $region17: #{tpu_custom_call.1} parent=15 // pred_check
          %p132 = pneg %p51
        $region18: #{tpu_custom_call.1} parent=15 // pred_check_branch
          %134 = sbr.rel (%p132) target = $region20
        $region19: #{tpu_custom_call.1} parent=15 // pred_region
          %s135 = sand.u32 %s41, 1
          %s136 = scalar_lea.sflag [#allocation3], %s135
          %s137 = sand.u32 %s41, 1
          %s138 = smul.addr %s137, 16
          %s139 = scalar_lea.vmem [#allocation2], %s138
          %s141 = ssub.s32 256, 256
          %142 = vsyncadd %s136, %s141
          %s143 = smul.addr %s24, 2
          %s144 = sadd.s32 %s25, %s143
          %s145 = smul.addr %s144, 128
          %s146 = scalar_lea.hbm %s0, %s145
          %s147 = sshll.u32 %s139, 4
          %s148 = int_to_ptr.vmem [resolvable:$true] %s147
          %153 = dma.hbm_to_vmem [thread:$0]  %s146, 256, %s148, %s136, 128, 128, 8
        $region20: #{tpu_custom_call.1} parent=15 // pred_fallthru
          _
        // Predicated region
        $region21: #{tpu_custom_call.1} parent=15 // pred_check
          %p154 = pneg %p79
        $region22: #{tpu_custom_call.1} parent=15 // pred_check_branch
          %156 = sbr.rel (%p154) target = $region24
        $region23: #{tpu_custom_call.1} parent=15 // pred_region
          %s157 = sand.u32 %s69, 1
          %s158 = scalar_lea.sflag [#allocation6], %s157
          %s159 = sand.u32 %s69, 1
          %s160 = smul.addr %s159, 8
          %s161 = scalar_lea.vmem [#allocation5], %s160
          %s163 = ssub.s32 128, 128
          %164 = vsyncadd %s158, %s163
          %s165 = sadd.s32 %s25, %s24
          %s166 = smul.addr %s165, 128
          %s167 = scalar_lea.hbm %s1, %s166
          %s169 = sshll.u32 %s161, 4
          %s170 = int_to_ptr.vmem [resolvable:$true] %s169
          %172 = dma.hbm_to_vmem [thread:$0]  %s167, 128, %s170, %s158
        $region24: #{tpu_custom_call.1} parent=15 // pred_fallthru
          _
      $region16: #{tpu_custom_call.1} parent=5 // pred_fallthru
        _
      %p173 = scmp.le.s32.totalorder 1, %s17
      %p174 = scmp.lt.s32.totalorder %s17, 3
      %p175 = pnand %p173, %p174
      %p176 = pneg %p175
      // Predicated region
      $region25: #{tpu_custom_call.1} parent=5 // pred_check
        _
      $region26: #{tpu_custom_call.1} parent=5 // pred_check_branch
        %178 = sbr.rel (%p175) target = $region28
      $region27: #{tpu_custom_call.1} parent=5 // pred_region
        %s179 = ssub.s32 %s17, 1
        %s180 = sand.u32 %s44, 1
        %s181 = scalar_lea.sflag [#allocation3], %s180
        %s182 = sand.u32 %s44, 1
        %s183 = smul.addr %s182, 16
        %s184 = scalar_lea.vmem [#allocation2], %s183
        // Predicated region
        $region29: #{tpu_custom_call.1} parent=27 // pred_check
          %p185 = pneg %p57
        $region30: #{tpu_custom_call.1} parent=27 // pred_check_branch
          %187 = sbr.rel (%p185) target = $region32
        $region31: #{tpu_custom_call.1} parent=27 // pred_region
          %188 = dma.done %s181, 256
        $region32: #{tpu_custom_call.1} parent=27 // pred_fallthru
          _
        %s189 = sand.u32 %s72, 1
        %s190 = scalar_lea.sflag [#allocation6], %s189
        %s191 = sand.u32 %s72, 1
        %s192 = smul.addr %s191, 8
        %s193 = scalar_lea.vmem [#allocation5], %s192
        // Predicated region
        $region33: #{tpu_custom_call.1} parent=27 // pred_check
          %p194 = pneg %p85
        $region34: #{tpu_custom_call.1} parent=27 // pred_check_branch
          %196 = sbr.rel (%p194) target = $region36
        $region35: #{tpu_custom_call.1} parent=27 // pred_region
          %197 = dma.done %s190, 128
        $region36: #{tpu_custom_call.1} parent=27 // pred_fallthru
          _
        %s198 = sand.u32 %s44, 1
        %s199 = scalar_lea.sflag [#allocation3], %s198
        %s200 = sand.u32 %s44, 1
        %s201 = smul.addr %s200, 16
        %s202 = scalar_lea.vmem [#allocation2], %s201
        %p203 = pneg %p57
        %p204 = pneg %p54
        %s205 = sand.u32 %s72, 1
        %s206 = scalar_lea.sflag [#allocation6], %s205
        %s207 = sand.u32 %s72, 1
        %s208 = smul.addr %s207, 8
        %s209 = scalar_lea.vmem [#allocation5], %s208
        %p210 = pneg %p85
        %p211 = pneg %p82
        %p212 = pneg %p113
        %p213 = pneg %p110
        %s214 = sand.u32 %s100, 1
        %s215 = scalar_lea.sflag [#allocation4], %s214
        %s216 = sand.u32 %s100, 1
        %s217 = smul.addr %s216, 8
        %s218 = scalar_lea.vmem [#allocation7], %s217
        %v219 = vld [vmem:[%s184] sm:$0xff]
        %s220 = scalar_lea.vmem %s184, 8 [#allocation2]
        %v221 = vld [vmem:[%s220] sm:$0xff]
        %v222 = vld [vmem:[%s193] sm:$0xff]
        %v223 = vsub.f32 %v221, %v219
        %v224 = vmul.f32 %v222, 2.0
        %v225 = vsub.f32 1.0, %v224
        %v226 = vmul.f32 %v225, %v223
        %v227 = vand.u32 2147483647, %v226
        %v228 = vsub.f32 0.0, %v227
        %v229 = vmul.f32 %v228, 1.442695
        %v230 = vpow.pop %v229
        %v231 = vadd.f32 %v230, 1.0
        %v232 = vrcp.pop %v231
        %vm233 = vcmp.ge.f32.partialorder %v226, 0.0
        %v234 = vsel %vm233, %v230, 1.0
        %v235 = vmul.f32 %v234, %v232
        %v236 = vmax.f32 %v226, 0.0
        %v237 = vlog2.pop %v231
        %v238 = vmul.f32 %v237, 0.6931472
        %v239 = vadd.f32 %v236, %v238
        %v240 = vsub.f32 1.0, %v235
        %v241 = vmul.f32 %v240, %v240
        %v242 = vmul.f32 %v241, %v241
        %v243 = vmul.f32 %v242, %v240
        %v244 = vmul.f32 %v222, 0.5
        %v245 = vadd.f32 %v244, 0.25
        %v246 = vmul.f32 %v243, %v239
        %v247 = vmul.f32 %v246, %v245
        %p248 = scmp.eq.s32.totalorder %s27, 0
        // Predicated region
        $region37: #{tpu_custom_call.1} parent=27 // pred_check
          %p249 = pneg %p248
        $region38: #{tpu_custom_call.1} parent=27 // pred_check_branch
          %251 = sbr.rel (%p249) target = $region40
        $region39: #{tpu_custom_call.1} parent=27 // pred_region
          %v252 = vlaneseq
          %v253 = vshrl.u32 %v252, 7
          %v254 = vlaneseq
          %v255 = vand.u32 %v254, 127
          %s256 = smul.u32 %s27, 8
          %v257 = vstv %s256
          %v258 = vadd.s32 %v257, %v253
          %v259 = vmul.u32 %v258, 128
          %v260 = vadd.s32 %v259, %v255
          %vm261 = vcmp.lt.s32.totalorder %v260, 256
          %v262 = vsel %vm261, %v247, 0.0
          %v263 = vadd.f32 %v262, 0.0
          %264 = vst [vmem:[%s218] sm:$0xff] %v263
        $region40: #{tpu_custom_call.1} parent=27 // pred_fallthru
          _
        %p265 = scmp.ne.s32.totalorder %s27, 0
        // Predicated region
        $region41: #{tpu_custom_call.1} parent=27 // pred_check
          %p266 = pneg %p265
        $region42: #{tpu_custom_call.1} parent=27 // pred_check_branch
          %268 = sbr.rel (%p266) target = $region44
        $region43: #{tpu_custom_call.1} parent=27 // pred_region
          %v269 = vadd.f32 %v247, 0.0
          %270 = vst [vmem:[%s218] sm:$0xff] %v269
        $region44: #{tpu_custom_call.1} parent=27 // pred_fallthru
          _
        %s271 = sand.u32 %s100, 1
        %s272 = scalar_lea.sflag [#allocation4], %s271
        %s273 = sand.u32 %s100, 1
        %s274 = smul.addr %s273, 8
        %s275 = scalar_lea.vmem [#allocation7], %s274
        // Predicated region
        $region45: #{tpu_custom_call.1} parent=27 // pred_check
          %p276 = pneg %p110
        $region46: #{tpu_custom_call.1} parent=27 // pred_check_branch
          %278 = sbr.rel (%p276) target = $region48
        $region47: #{tpu_custom_call.1} parent=27 // pred_region
          %s280 = ssub.s32 128, 128
          %281 = vsyncadd %s272, %s280
          %s282 = sadd.s32 %s27, %s26
          %s283 = smul.addr %s282, 128
          %s284 = scalar_lea.hbm %s2, %s283
          %s286 = sshll.u32 %s275, 4
          %s287 = int_to_ptr.vmem [resolvable:$true] %s286
          %289 = dma.vmem_to_hbm [thread:$0]  %s287, 128, %s284, %s272
        $region48: #{tpu_custom_call.1} parent=27 // pred_fallthru
          _
      $region28: #{tpu_custom_call.1} parent=5 // pred_fallthru
        _
      %p290 = scmp.le.s32.totalorder 2, %s17
      // Predicated region
      $region49: #{tpu_custom_call.1} parent=5 // pred_check
        %p291 = pneg %p290
      $region50: #{tpu_custom_call.1} parent=5 // pred_check_branch
        %293 = sbr.rel (%p291) target = $region52
      $region51: #{tpu_custom_call.1} parent=5 // pred_region
        %s294 = ssub.s32 %s17, 2
        // Predicated region
        $region53: #{tpu_custom_call.1} parent=51 // pred_check
          %p295 = pneg %p116
        $region54: #{tpu_custom_call.1} parent=51 // pred_check_branch
          %297 = sbr.rel (%p295) target = $region56
        $region55: #{tpu_custom_call.1} parent=51 // pred_region
          %s298 = sand.u32 %s101, 1
          %s299 = scalar_lea.sflag [#allocation4], %s298
          %s300 = sand.u32 %s101, 1
          %s301 = smul.addr %s300, 8
          %s302 = scalar_lea.vmem [#allocation7], %s301
          %303 = dma.done %s299, 128
        $region56: #{tpu_custom_call.1} parent=51 // pred_fallthru
          _
      $region52: #{tpu_custom_call.1} parent=5 // pred_fallthru
        _
    $region6: #{tpu_custom_call.1} parent=1 // loop_footer
      %s21 = sadd.s32 1, %s17
    $region7: #{tpu_custom_call.1} parent=1 // loop_footer_branch
      %16 = sbr.rel target = $region3
    $region8: #{tpu_custom_call.1} parent=1 // loop_exit
      _
    %304 = vsyncpa [#allocation3], 1
    %s305 = scalar_lea.sflag [#allocation3], 1
    %306 = vsyncpa %s305, 1
    %307 = vsyncpa [#allocation6], 1
    %s308 = scalar_lea.sflag [#allocation6], 1
    %309 = vsyncpa %s308, 1
    %310 = vsyncpa [#allocation4], 1
    %s311 = scalar_lea.sflag [#allocation4], 1
    %312 = vsyncpa %s311, 1

</llo_original>
